<compile_context>
chip_gen: v7x
topology: tpu7x:2x2x1
jax: 0.10.0
libtpu: 0.0.40
codegen_flags: <defaults>
</compile_context>

<pallas_src>
import jax
import jax.numpy as jnp
from jax.experimental import pallas as pl
from jax.experimental.pallas import tpu as pltpu


def _round_up(x, m):
    return (x + m - 1) // m * m


# ----------------------------------------------------------------------------
# Stage 1:  y = bn1( sum_{r,d} rel[b,r] * bn0(e1)[b,d] * W[r,d,e] )
# grid = (De tiles ["parallel"], r-chunks ["arbitrary"]), f32 accumulator scratch.
# ----------------------------------------------------------------------------
def tucker_bilinear_kernel(e1_ref, rel_ref, w_ref,
                           bn0_scale_ref, bn0_bias_ref,
                           bn1_scale_ref, bn1_bias_ref,
                           y_ref, acc_ref):
    r_step = pl.program_id(1)

    @pl.when(r_step == 0)
    def _():
        acc_ref[...] = jnp.zeros_like(acc_ref)

    rc = rel_ref.shape[1]                      # static (small, e.g. 8)

    # bn0 (eval, folded) — f32 VPU math; e1 block is resident, recompute is tiny.
    x = e1_ref[...] * bn0_scale_ref[...] + bn0_bias_ref[...]          # (B, De_pad) f32

    # z[b, r*De_pad + d] = rel[b, r] * x[b, d]   (lane-aligned concat, Rc-way unroll)
    rel = rel_ref[...]                                                # (B, Rc) f32
    parts = [rel[:, r:r + 1] * x for r in range(rc)]
    z = jnp.concatenate(parts, axis=1).astype(w_ref.dtype)            # (B, Rc*De_pad)

    # MXU contraction over (r, d) jointly; f32 accumulation in VMEM scratch.
    acc_ref[...] += jnp.dot(z, w_ref[...], preferred_element_type=jnp.float32)

    @pl.when(r_step == pl.num_programs(1) - 1)
    def _():
        y = acc_ref[...] * bn1_scale_ref[...] + bn1_bias_ref[...]     # bn1 (eval, folded)
        y_ref[...] = y.astype(y_ref.dtype)


# ----------------------------------------------------------------------------
# Stage 2:  pred_tile = sigmoid(y @ ent_T_tile), pipelined over entity tiles.
# ----------------------------------------------------------------------------
def tucker_logits_kernel(y_ref, ent_ref, out_ref):
    logits = jnp.dot(y_ref[...], ent_ref[...],
                     preferred_element_type=jnp.float32)              # (B, TE) f32
    out_ref[...] = jax.nn.sigmoid(logits).astype(out_ref.dtype)


# ----------------------------------------------------------------------------
# One-time parameter preparation (hoisted out of the forward pass).
# ----------------------------------------------------------------------------
def prepare_tucker(params, *, compute_dtype=jnp.bfloat16,
                   r_chunk=8, e_tile=1024, de_tile=128):
    ent_w = params["entities"].astype(jnp.float32)       # (E, De)
    rel_w = params["relations"].astype(jnp.float32)      # (R, Dr)
    W = params["W"].astype(jnp.float32)                  # (Dr, De, De)

    E, De = ent_w.shape
    Dr = rel_w.shape[1]

    De_pad = _round_up(De, 128)                          # lane-dense entity dim
    Dr_pad = _round_up(Dr, r_chunk)                      # r-chunk multiple

    # Output-De tile (multiple of 128, divides De_pad).
    TDe = max(128, (min(de_tile, De_pad) // 128) * 128)
    while De_pad % TDe:
        TDe -= 128

    # Entity tile for the logits matmul (lane-dense, large for mem-bound streaming).
    TE = min(_round_up(e_tile, 128), _round_up(E, 128))
    E_pad = _round_up(E, TE)

    # Embedding tables pre-padded along the feature dim so per-call gathers need no pad.
    entities_pad = jnp.pad(ent_w, ((0, 0), (0, De_pad - De)))          # (E, De_pad) f32
    relations_pad = jnp.pad(rel_w, ((0, 0), (0, Dr_pad - Dr)))         # (R, Dr_pad) f32

    # W2[(r*De_pad + d), e] = W[r, d, e]  (contract (r,d) jointly), padded & cast once.
    W2 = jnp.pad(W, ((0, Dr_pad - Dr), (0, De_pad - De), (0, De_pad - De)))
    W2 = W2.reshape(Dr_pad * De_pad, De_pad).astype(compute_dtype)

    # Pre-transposed entity table for a canonical (B,De)@(De,E) logits matmul.
    ent_T = jnp.pad(ent_w.T, ((0, De_pad - De), (0, E_pad - E))).astype(compute_dtype)

    eps = 1e-5

    def fold_bn(p):
        scale = p["gamma"] / jnp.sqrt(p["running_var"] + eps)
        bias = p["beta"] - p["running_mean"] * scale
        scale = jnp.pad(scale, (0, De_pad - De)).reshape(1, De_pad)
        bias = jnp.pad(bias, (0, De_pad - De)).reshape(1, De_pad)
        return scale.astype(jnp.float32), bias.astype(jnp.float32)

    bn0_scale, bn0_bias = fold_bn(params["bn0"])
    bn1_scale, bn1_bias = fold_bn(params["bn1"])

    return {
        "entities_pad": entities_pad, "relations_pad": relations_pad,
        "W2": W2, "ent_T": ent_T,
        "bn0_scale": bn0_scale, "bn0_bias": bn0_bias,
        "bn1_scale": bn1_scale, "bn1_bias": bn1_bias,
        "E": E, "De": De, "Dr": Dr,
        "De_pad": De_pad, "Dr_pad": Dr_pad, "E_pad": E_pad,
        "TDe": TDe, "TE": TE, "Rc": r_chunk,
        "compute_dtype": compute_dtype,
    }


# ----------------------------------------------------------------------------
# Forward pass: tiny gathers + batch padding in JAX, hot path in two Pallas calls.
# ----------------------------------------------------------------------------
def tucker_forward(e1_ids, rel_ids, prep):
    cdtype = prep["compute_dtype"]
    De_pad, Dr_pad, E_pad = prep["De_pad"], prep["Dr_pad"], prep["E_pad"]
    TDe, TE, Rc = prep["TDe"], prep["TE"], prep["Rc"]
    E = prep["E"]

    B = e1_ids.shape[0]
    B_pad = _round_up(B, 16)                             # bf16 sublane packing (16 rows)

    # Embedding gathers (cheap glue; tables pre-padded along feature dims).
    e1_emb = prep["entities_pad"][e1_ids]                # (B, De_pad) f32
    rel_emb = prep["relations_pad"][rel_ids]             # (B, Dr_pad) f32
    e1_emb = jnp.pad(e1_emb, ((0, B_pad - B), (0, 0)))
    rel_emb = jnp.pad(rel_emb, ((0, B_pad - B), (0, 0)))

    n_rc = Dr_pad // Rc
    n_de = De_pad // TDe
    # (n_rc, B_pad, Rc): r-chunk-major layout so each grid step gets its rel slice.
    rel_chunks = rel_emb.reshape(B_pad, n_rc, Rc).transpose(1, 0, 2)

    # --- Stage 1: r-chunk-streamed bilinear form with f32 accumulator -------
    y = pl.pallas_call(
        tucker_bilinear_kernel,
        out_shape=jax.ShapeDtypeStruct((B_pad, De_pad), cdtype),
        grid=(n_de, n_rc),
        in_specs=[
            pl.BlockSpec((B_pad, De_pad), lambda e, r: (0, 0)),        # e1 (resident)
            pl.BlockSpec((None, B_pad, Rc), lambda e, r: (r, 0, 0)),   # rel chunk
            pl.BlockSpec((Rc * De_pad, TDe), lambda e, r: (r, e)),     # W chunk (streamed)
            pl.BlockSpec((1, De_pad), lambda e, r: (0, 0)),            # bn0 scale
            pl.BlockSpec((1, De_pad), lambda e, r: (0, 0)),            # bn0 bias
            pl.BlockSpec((1, TDe), lambda e, r: (0, e)),               # bn1 scale
            pl.BlockSpec((1, TDe), lambda e, r: (0, e)),               # bn1 bias
        ],
        out_specs=pl.BlockSpec((B_pad, TDe), lambda e, r: (0, e)),
        scratch_shapes=[pltpu.VMEM((B_pad, TDe), jnp.float32)],
        compiler_params=pltpu.CompilerParams(
            dimension_semantics=("parallel", "arbitrary"),
            vmem_limit_bytes=32 * 1024 * 1024,
        ),
    )(e1_emb, rel_chunks, prep["W2"],
      prep["bn0_scale"], prep["bn0_bias"], prep["bn1_scale"], prep["bn1_bias"])

    # --- Stage 2: logits + sigmoid, pipelined over entity tiles -------------
    num_tiles = E_pad // TE
    pred = pl.pallas_call(
        tucker_logits_kernel,
        out_shape=jax.ShapeDtypeStruct((B_pad, E_pad), cdtype),       # bf16 writeback
        grid=(num_tiles,),
        in_specs=[
            pl.BlockSpec((B_pad, De_pad), lambda j: (0, 0)),          # y: resident
            pl.BlockSpec((De_pad, TE), lambda j: (0, j)),             # entity table: streamed
        ],
        out_specs=pl.BlockSpec((B_pad, TE), lambda j: (0, j)),        # lane-dense output
        compiler_params=pltpu.CompilerParams(
            dimension_semantics=("parallel",),
            vmem_limit_bytes=32 * 1024 * 1024,
        ),
    )(y, prep["ent_T"])

    return pred[:B, :E]


# ----------------------------------------------------------------------------
# Pure-JAX reference mirroring the PyTorch forward (eval mode).
# ----------------------------------------------------------------------------
def tucker_reference(e1_ids, rel_ids, params):
    ent_w = params["entities"]
    rel_w = params["relations"]
    W = params["W"]
    De = ent_w.shape[1]
    Dr = rel_w.shape[1]
    eps = 1e-5

    e1_emb = ent_w[e1_ids]
    rel_emb = rel_w[rel_ids]

    def bn(x, p):
        return (x - p["running_mean"]) / jnp.sqrt(p["running_var"] + eps) \
               * p["gamma"] + p["beta"]

    x = bn(e1_emb, params["bn0"])
    W_mat = rel_emb @ W.reshape(Dr, -1)
    W_mat = W_mat.reshape(-1, De, De)
    x = jnp.einsum("bd,bde->be", x, W_mat)
    x = bn(x, params["bn1"])
    x = x @ ent_w.T
    return jax.nn.sigmoid(x)


def init_params(key, num_entities, num_relations, entity_dim, relation_dim):
    k_ent, k_rel, k_w = jax.random.split(key, 3)
    # xavier_normal_: std = sqrt(2 / (fan_in + fan_out))
    ent_std = (2.0 / (num_entities + entity_dim)) ** 0.5
    rel_std = (2.0 / (num_relations + relation_dim)) ** 0.5
    entities = ent_std * jax.random.normal(
        k_ent, (num_entities, entity_dim), jnp.float32)
    relations = rel_std * jax.random.normal(
        k_rel, (num_relations, relation_dim), jnp.float32)
    W = jax.random.uniform(
        k_w, (relation_dim, entity_dim, entity_dim), jnp.float32, -1.0, 1.0)

    def bn_params(dim):
        return {
            "gamma": jnp.ones((dim,), jnp.float32),
            "beta": jnp.zeros((dim,), jnp.float32),
            "running_mean": jnp.zeros((dim,), jnp.float32),
            "running_var": jnp.ones((dim,), jnp.float32),
        }

    return {
        "entities": entities,
        "relations": relations,
        "W": W,
        "bn0": bn_params(entity_dim),
        "bn1": bn_params(entity_dim),
    }


if __name__ == "__main__":
    num_entities = 64
    num_relations = 16
    entity_dim = 32
    relation_dim = 16
    batch = 8

    key = jax.random.PRNGKey(0)
    k_params, k_e1, k_rel = jax.random.split(key, 3)

    params = init_params(k_params, num_entities, num_relations,
                         entity_dim, relation_dim)
    e1_ids = jax.random.randint(k_e1, (batch,), 0, num_entities)
    rel_ids = jax.random.randint(k_rel, (batch,), 0, num_relations)

    ref = tucker_reference(e1_ids, rel_ids, params)

    # f32 path (tight tolerance).
    prep_f32 = prepare_tucker(params, compute_dtype=jnp.float32)
    pred_f32 = jax.block_until_ready(tucker_forward(e1_ids, rel_ids, prep_f32))
    assert pred_f32.shape == (batch, num_entities)
    assert jnp.allclose(pred_f32, ref, atol=1e-4, rtol=1e-4), \
        f"f32 max abs err = {jnp.max(jnp.abs(pred_f32 - ref))}"

    # bf16 MXU-operand path (default for v6e/v7x; looser tolerance).
    prep_bf16 = prepare_tucker(params, compute_dtype=jnp.bfloat16)
    pred_bf16 = jax.block_until_ready(tucker_forward(e1_ids, rel_ids, prep_bf16))
    assert pred_bf16.shape == (batch, num_entities)
    assert jnp.allclose(pred_bf16, ref, atol=2e-2, rtol=2e-2), \
        f"bf16 max abs err = {jnp.max(jnp.abs(pred_bf16 - ref))}"

    print("KERNEL_OK")
</pallas_src>

<mosaic_0001>
module attributes {stable_mosaic.version = 11 : i64} {
  func.func @tucker_bilinear_kernel(%arg0: i32, %arg1: i32, %arg2: memref<16x128xf32, #tpu.memory_space<vmem>>, %arg3: memref<1x16x8xf32, #tpu.memory_space<vmem>>, %arg4: memref<1024x128xf32, #tpu.memory_space<vmem>>, %arg5: memref<1x128xf32, #tpu.memory_space<vmem>>, %arg6: memref<1x128xf32, #tpu.memory_space<vmem>>, %arg7: memref<1x128xf32, #tpu.memory_space<vmem>>, %arg8: memref<1x128xf32, #tpu.memory_space<vmem>>, %arg9: memref<16x128xf32, #tpu.memory_space<vmem>>, %arg10: memref<16x128xf32, #tpu.memory_space<vmem>>) attributes {dimension_semantics = [#tpu.dimension_semantics<parallel>, #tpu.dimension_semantics<arbitrary>], iteration_bounds = array<i64: 1, 2>, scalar_prefetch = 0 : i64, scratch_operands = 1 : i64, tpu.core_type = #tpu.core_type<tc>, window_params = [{pipeline_mode = #tpu.pipeline_mode<synchronous>, transform_indices = @transform_0, window_bounds = array<i64: 16, 128>}, {transform_indices = @transform_1, window_bounds = array<i64: 1, 16, 8>}, {transform_indices = @transform_2, window_bounds = array<i64: 1024, 128>}, {pipeline_mode = #tpu.pipeline_mode<synchronous>, transform_indices = @transform_3, window_bounds = array<i64: 1, 128>}, {pipeline_mode = #tpu.pipeline_mode<synchronous>, transform_indices = @transform_4, window_bounds = array<i64: 1, 128>}, {transform_indices = @transform_5, window_bounds = array<i64: 1, 128>}, {transform_indices = @transform_6, window_bounds = array<i64: 1, 128>}, {transform_indices = @transform_7, window_bounds = array<i64: 16, 128>}]} {
    %c0_i32 = arith.constant 0 : i32
    %0 = arith.cmpi eq, %arg1, %c0_i32 : i32
    %1 = arith.extui %0 : i1 to i32
    %c0_i32_0 = arith.constant 0 : i32
    %2 = arith.cmpi ne, %1, %c0_i32_0 : i32
    scf.if %2 {
      %cst_16 = arith.constant 0.000000e+00 : f32
      %45 = vector.broadcast %cst_16 : f32 to vector<16x128xf32>
      %c0_17 = arith.constant 0 : index
      %c0_18 = arith.constant 0 : index
      %46 = vector.load %arg10[%c0_17, %c0_18] : memref<16x128xf32, #tpu.memory_space<vmem>>, vector<16x128xf32>
      tpu.vector_store %arg10[%c0_17, %c0_18], %45 {strides = array<i32>} : memref<16x128xf32, #tpu.memory_space<vmem>>, vector<16x128xf32>,
    } else {
    }
    %c0 = arith.constant 0 : index
    %c0_1 = arith.constant 0 : index
    %3 = vector.load %arg2[%c0, %c0_1] : memref<16x128xf32, #tpu.memory_space<vmem>>, vector<16x128xf32>
    %c0_2 = arith.constant 0 : index
    %c0_3 = arith.constant 0 : index
    %4 = vector.load %arg5[%c0_2, %c0_3] : memref<1x128xf32, #tpu.memory_space<vmem>>, vector<1x128xf32>
    %5 = vector.broadcast %4 : vector<1x128xf32> to vector<16x128xf32>
    %6 = arith.mulf %3, %5 : vector<16x128xf32>
    %c0_4 = arith.constant 0 : index
    %c0_5 = arith.constant 0 : index
    %7 = vector.load %arg6[%c0_4, %c0_5] : memref<1x128xf32, #tpu.memory_space<vmem>>, vector<1x128xf32>
    %8 = vector.broadcast %7 : vector<1x128xf32> to vector<16x128xf32>
    %9 = arith.addf %6, %8 : vector<16x128xf32>
    %c0_6 = arith.constant 0 : index
    %c0_7 = arith.constant 0 : index
    %c0_8 = arith.constant 0 : index
    %10 = vector.load %arg3[%c0_6, %c0_7, %c0_8] : memref<1x16x8xf32, #tpu.memory_space<vmem>>, vector<1x16x8xf32>
    %11 = vector.shape_cast %10 : vector<1x16x8xf32> to vector<16x8xf32>
    %12 = vector.extract_strided_slice %11 {offsets = [0, 0], sizes = [16, 1], strides = [1, 1]} : vector<16x8xf32> to vector<16x1xf32>
    %13 = vector.broadcast %12 : vector<16x1xf32> to vector<16x128xf32>
    %14 = arith.mulf %13, %9 : vector<16x128xf32>
    %15 = vector.extract_strided_slice %11 {offsets = [0, 1], sizes = [16, 1], strides = [1, 1]} : vector<16x8xf32> to vector<16x1xf32>
    %16 = vector.broadcast %15 : vector<16x1xf32> to vector<16x128xf32>
    %17 = arith.mulf %16, %9 : vector<16x128xf32>
    %18 = vector.extract_strided_slice %11 {offsets = [0, 2], sizes = [16, 1], strides = [1, 1]} : vector<16x8xf32> to vector<16x1xf32>
    %19 = vector.broadcast %18 : vector<16x1xf32> to vector<16x128xf32>
    %20 = arith.mulf %19, %9 : vector<16x128xf32>
    %21 = vector.extract_strided_slice %11 {offsets = [0, 3], sizes = [16, 1], strides = [1, 1]} : vector<16x8xf32> to vector<16x1xf32>
    %22 = vector.broadcast %21 : vector<16x1xf32> to vector<16x128xf32>
    %23 = arith.mulf %22, %9 : vector<16x128xf32>
    %24 = vector.extract_strided_slice %11 {offsets = [0, 4], sizes = [16, 1], strides = [1, 1]} : vector<16x8xf32> to vector<16x1xf32>
    %25 = vector.broadcast %24 : vector<16x1xf32> to vector<16x128xf32>
    %26 = arith.mulf %25, %9 : vector<16x128xf32>
    %27 = vector.extract_strided_slice %11 {offsets = [0, 5], sizes = [16, 1], strides = [1, 1]} : vector<16x8xf32> to vector<16x1xf32>
    %28 = vector.broadcast %27 : vector<16x1xf32> to vector<16x128xf32>
    %29 = arith.mulf %28, %9 : vector<16x128xf32>
    %30 = vector.extract_strided_slice %11 {offsets = [0, 6], sizes = [16, 1], strides = [1, 1]} : vector<16x8xf32> to vector<16x1xf32>
    %31 = vector.broadcast %30 : vector<16x1xf32> to vector<16x128xf32>
    %32 = arith.mulf %31, %9 : vector<16x128xf32>
    %33 = vector.extract_strided_slice %11 {offsets = [0, 7], sizes = [16, 1], strides = [1, 1]} : vector<16x8xf32> to vector<16x1xf32>
    %34 = vector.broadcast %33 : vector<16x1xf32> to vector<16x128xf32>
    %35 = arith.mulf %34, %9 : vector<16x128xf32>
    %36 = tpu.concatenate %14, %17, %20, %23, %26, %29, %32, %35 in 1 : vector<16x128xf32>, vector<16x128xf32>, vector<16x128xf32>, vector<16x128xf32>, vector<16x128xf32>, vector<16x128xf32>, vector<16x128xf32>, vector<16x128xf32> -> vector<16x1024xf32>
    %c0_9 = arith.constant 0 : index
    %c0_10 = arith.constant 0 : index
    %37 = vector.load %arg10[%c0_9, %c0_10] : memref<16x128xf32, #tpu.memory_space<vmem>>, vector<16x128xf32>
    %c0_11 = arith.constant 0 : index
    %c0_12 = arith.constant 0 : index
    %38 = vector.load %arg4[%c0_11, %c0_12] : memref<1024x128xf32, #tpu.memory_space<vmem>>, vector<1024x128xf32>
    %cst = arith.constant dense<0.000000e+00> : vector<16x128xf32>
    %39 = tpu.matmul %36, %38, %cst {dimension_numbers = #tpu.dot_dimension_numbers<[1], [0], [0], [1], [0, 0, 1, 1], [], []>} : vector<16x1024xf32>, vector<1024x128xf32>, vector<16x128xf32> -> vector<16x128xf32>
    %40 = arith.addf %37, %39 : vector<16x128xf32>
    %c0_13 = arith.constant 0 : index
    %c0_14 = arith.constant 0 : index
    %41 = vector.load %arg10[%c0_13, %c0_14] : memref<16x128xf32, #tpu.memory_space<vmem>>, vector<16x128xf32>
    tpu.vector_store %arg10[%c0_13, %c0_14], %40 {strides = array<i32>} : memref<16x128xf32, #tpu.memory_space<vmem>>, vector<16x128xf32>,
    %c1_i32 = arith.constant 1 : i32
    %42 = arith.cmpi eq, %arg1, %c1_i32 : i32
    %43 = arith.extui %42 : i1 to i32
    %c0_i32_15 = arith.constant 0 : i32
    %44 = arith.cmpi ne, %43, %c0_i32_15 : i32
    scf.if %44 {
      %c0_16 = arith.constant 0 : index
      %c0_17 = arith.constant 0 : index
      %45 = vector.load %arg10[%c0_16, %c0_17] : memref<16x128xf32, #tpu.memory_space<vmem>>, vector<16x128xf32>
      %c0_18 = arith.constant 0 : index
      %c0_19 = arith.constant 0 : index
      %46 = vector.load %arg7[%c0_18, %c0_19] : memref<1x128xf32, #tpu.memory_space<vmem>>, vector<1x128xf32>
      %47 = vector.broadcast %46 : vector<1x128xf32> to vector<16x128xf32>
      %48 = arith.mulf %45, %47 : vector<16x128xf32>
      %c0_20 = arith.constant 0 : index
      %c0_21 = arith.constant 0 : index
      %49 = vector.load %arg8[%c0_20, %c0_21] : memref<1x128xf32, #tpu.memory_space<vmem>>, vector<1x128xf32>
      %50 = vector.broadcast %49 : vector<1x128xf32> to vector<16x128xf32>
      %51 = arith.addf %48, %50 : vector<16x128xf32>
      %c0_22 = arith.constant 0 : index
      %c0_23 = arith.constant 0 : index
      %52 = vector.load %arg9[%c0_22, %c0_23] : memref<16x128xf32, #tpu.memory_space<vmem>>, vector<16x128xf32>
      tpu.vector_store %arg9[%c0_22, %c0_23], %51 {strides = array<i32>} : memref<16x128xf32, #tpu.memory_space<vmem>>, vector<16x128xf32>,
    } else {
    }
    return
  }
  func.func @transform_0(%arg0: i32, %arg1: i32) -> (i32, i32) {
    %c0_i32 = arith.constant 0 : i32
    %c0_i32_0 = arith.constant 0 : i32
    %c0_i32_1 = arith.constant 0 : i32
    return %c0_i32, %c0_i32_0 : i32, i32
  }
  func.func @transform_1(%arg0: i32, %arg1: i32) -> (i32, i32, i32) {
    %c0_i32 = arith.constant 0 : i32
    %c0_i32_0 = arith.constant 0 : i32
    %c0_i32_1 = arith.constant 0 : i32
    return %arg1, %c0_i32, %c0_i32_0 : i32, i32, i32
  }
  func.func @transform_2(%arg0: i32, %arg1: i32) -> (i32, i32) {
    %c0_i32 = arith.constant 0 : i32
    return %arg1, %arg0 : i32, i32
  }
  func.func @transform_3(%arg0: i32, %arg1: i32) -> (i32, i32) {
    %c0_i32 = arith.constant 0 : i32
    %c0_i32_0 = arith.constant 0 : i32
    %c0_i32_1 = arith.constant 0 : i32
    return %c0_i32, %c0_i32_0 : i32, i32
  }
  func.func @transform_4(%arg0: i32, %arg1: i32) -> (i32, i32) {
    %c0_i32 = arith.constant 0 : i32
    %c0_i32_0 = arith.constant 0 : i32
    %c0_i32_1 = arith.constant 0 : i32
    return %c0_i32, %c0_i32_0 : i32, i32
  }
  func.func @transform_5(%arg0: i32, %arg1: i32) -> (i32, i32) {
    %c0_i32 = arith.constant 0 : i32
    %c0_i32_0 = arith.constant 0 : i32
    return %c0_i32, %arg0 : i32, i32
  }
  func.func @transform_6(%arg0: i32, %arg1: i32) -> (i32, i32) {
    %c0_i32 = arith.constant 0 : i32
    %c0_i32_0 = arith.constant 0 : i32
    return %c0_i32, %arg0 : i32, i32
  }
  func.func @transform_7(%arg0: i32, %arg1: i32) -> (i32, i32) {
    %c0_i32 = arith.constant 0 : i32
    %c0_i32_0 = arith.constant 0 : i32
    return %c0_i32, %arg0 : i32, i32
  }
}

</mosaic_0001>

<llo_original>
// kernel: tpu_custom_call.1
$region0: #{tpu_custom_call.1}
  #allocation0 [shape = 'u32[]', space=smem, size = 0x4, offset = 0x4, fixed_abs, tag = 'smem constant byte address 0x4 - core index']
  #allocation1 [shape = 'u32[144,128]{1,0:T(1,128)}', space=vmem, size = 0x12000, scoped, tag = 'internal scratch']
  #allocation2 [shape = 'f32[16,128]{1,0:T(8,128)}', space=vmem, size = 0x2000, scoped, tag = 'scratch operand']
  %s0 = inlined_call_operand.vmem [shape: f32[16,128], index: 0, kind: input, shape index: {}]
  %s1 = inlined_call_operand.vmem [shape: f32[2,16,8], index: 1, kind: input, shape index: {}]
  %s2 = inlined_call_operand.hbm [shape: f32[2048,128], index: 2, kind: input, shape index: {}]
  %s3 = inlined_call_operand.vmem [shape: f32[1,128], index: 3, kind: input, shape index: {}]
  %s4 = inlined_call_operand.vmem [shape: f32[1,128], index: 4, kind: input, shape index: {}]
  %s5 = inlined_call_operand.vmem [shape: f32[1,128], index: 5, kind: input, shape index: {}]
  %s6 = inlined_call_operand.vmem [shape: f32[1,128], index: 6, kind: input, shape index: {}]
  %s7 = inlined_call_operand.hbm [shape: f32[16,128], index: 7, kind: output, shape index: {}]
  %s8 = sld [smem:[#allocation0]]
  $region73: #{tpu_custom_call.1} parent=0
    _
  %s10 = ssub.s32 1, %s8
  %s11 = scalar_select 0, %s10, %s8
  $region1: #{tpu_custom_call.1} parent=0
    #allocation3 [shape = 'u8[1048576]{0}', space=vmem, size = 0x100000, scoped, tag = 'input window, operand 2']
    #allocation4 [shape = 's32[2]{0}', space=sflag, size = 0x8, scoped, tag = 'scoped memory for tpu_custom_call.1']
    #allocation5 [shape = 's32[2]{0}', space=sflag, size = 0x8, scoped, tag = 'scoped memory for tpu_custom_call.1']
    #allocation6 [shape = 'u8[8192]{0}', space=vmem, size = 0x2000, scoped, tag = 'output window, operand 0, single buffered']
    %12 = vsyncpa [#allocation4], 0
    %s13 = scalar_lea.sflag [#allocation4], 1
    %14 = vsyncpa %s13, 0
    %15 = vsyncpa [#allocation5], 0
    loop: start=0, step=1, limit=4
    $region2: #{tpu_custom_call.1} parent=1 // loop_pre_header
      _
    $region3: #{tpu_custom_call.1} parent=1 // loop_header
      %s17 = sphi 0, %s21
      %p18 = scmp.ge.s32.totalorder %s17, 4
      %s24 = sphi 0, %s36
      %s25 = sphi 0, %s32
      %s26 = sphi 0, %s24
      %s27 = sphi 0, %s25
      %s28 = sphi 0, %s26
      %s29 = sphi 0, %s27
      %s37 = sphi 0, %s37
      %s39 = sphi 0, %s37
      %s40 = sphi 0, %s39
      %s54 = sphi 0, %s40
      %s60 = sphi 0, %s62
      %s63 = sphi 0, %s60
      %s64 = sphi 0, %s63
      %s80 = sphi 0, %s64
      %s88 = sphi 0, %s90
      %s91 = sphi 0, %s88
      %s92 = sphi 0, %s91
      %s108 = sphi 0, %s92
      %s112 = sphi 0, %s112
      %s114 = sphi 0, %s112
      %s115 = sphi 0, %s114
      %s129 = sphi 0, %s115
      %s133 = sphi 0, %s133
      %s135 = sphi 0, %s133
      %s136 = sphi 0, %s135
      %s150 = sphi 0, %s136
      %s156 = sphi 0, %s158
      %s159 = sphi 0, %s156
      %s160 = sphi 0, %s159
      %s176 = sphi 0, %s160
      %s182 = sphi 0, %s184
      %s185 = sphi 0, %s182
      %s186 = sphi 0, %s185
      %s202 = sphi 0, %s186
      %s208 = sphi 0, %s210
      %s211 = sphi 0, %s208
      %s212 = sphi 0, %s211
      %s228 = sphi 0, %s212
    $region4: #{tpu_custom_call.1} parent=1 // loop_header_branch
      %20 = sbr.rel (%p18) target = $region8
    $region5: #{tpu_custom_call.1} parent=1 // loop_body
      %s22 = ssub.s32 %s17, 1
      %s23 = ssub.s32 %s17, 2
      %s30 = sadd.s32 1, %s25
      %p31 = scmp.ge.s32.totalorder %s30, 2
      %s32 = scalar_select %p31, 0, %s30
      %s33 = sadd.s32 1, %s24
      %s34 = scalar_select %p31, %s33, %s24
      %p35 = scmp.ge.s32.totalorder %s34, 1
      %s36 = scalar_select %p35, 0, %s34
      %s38 = sadd.s32 %s37, 1
      %p41 = scmp.eq.s32.totalorder %s17, 1
      %p42 = scmp.ne.s32.totalorder %s37, %s39
      %p43 = scmp.eq.s32.totalorder %s17, 0
      %p44 = por %p42, %p43
      %p45 = scmp.ne.s32.totalorder %s37, %s39
      %p46 = scmp.eq.s32.totalorder %s22, 1
      %p47 = por %p45, %p46
      %p48 = scmp.ne.s32.totalorder %s39, %s40
      %p49 = scmp.eq.s32.totalorder %s22, 0
      %p50 = por %p48, %p49
      %p51 = scmp.ne.s32.totalorder %s39, %s40
      %p52 = scmp.eq.s32.totalorder %s23, 1
      %p53 = por %p51, %p52
      %p55 = scmp.ne.s32.totalorder %s40, %s54
      %p56 = scmp.eq.s32.totalorder %s23, 0
      %p57 = por %p55, %p56
      %s58 = ssub.s32 %s25, %s32
      %p59 = scmp.eq.s32.totalorder %s58, 0
      %s61 = sadd.s32 %s60, 1
      %s62 = scalar_select %p59, %s60, %s61
      %p65 = pneg %p59
      %p66 = scmp.eq.s32.totalorder %s17, 1
      %p67 = por %p65, %p66
      %p68 = scmp.ne.s32.totalorder %s60, %s63
      %p69 = scmp.eq.s32.totalorder %s17, 0
      %p70 = por %p68, %p69
      %p71 = scmp.ne.s32.totalorder %s60, %s63
      %p72 = scmp.eq.s32.totalorder %s22, 1
      %p73 = por %p71, %p72
      %p74 = scmp.ne.s32.totalorder %s63, %s64
      %p75 = scmp.eq.s32.totalorder %s22, 0
      %p76 = por %p74, %p75
      %p77 = scmp.ne.s32.totalorder %s63, %s64
      %p78 = scmp.eq.s32.totalorder %s23, 1
      %p79 = por %p77, %p78
      %p81 = scmp.ne.s32.totalorder %s64, %s80
      %p82 = scmp.eq.s32.totalorder %s23, 0
      %p83 = por %p81, %p82
      %s84 = ssub.s32 %s25, %s32
      %s85 = ssub.s32 %s24, %s36
      %s86 = sor.u32 %s84, %s85
      %p87 = scmp.eq.s32.totalorder %s86, 0
      %s89 = sadd.s32 %s88, 1
      %s90 = scalar_select %p87, %s88, %s89
      %p93 = pneg %p87
      %p94 = scmp.eq.s32.totalorder %s17, 1
      %p95 = por %p93, %p94
      %p96 = scmp.ne.s32.totalorder %s88, %s91
      %p97 = scmp.eq.s32.totalorder %s17, 0
      %p98 = por %p96, %p97
      %p99 = scmp.ne.s32.totalorder %s88, %s91
      %p100 = scmp.eq.s32.totalorder %s22, 1
      %p101 = por %p99, %p100
      %p102 = scmp.ne.s32.totalorder %s91, %s92
      %p103 = scmp.eq.s32.totalorder %s22, 0
      %p104 = por %p102, %p103
      %p105 = scmp.ne.s32.totalorder %s91, %s92
      %p106 = scmp.eq.s32.totalorder %s23, 1
      %p107 = por %p105, %p106
      %p109 = scmp.ne.s32.totalorder %s92, %s108
      %p110 = scmp.eq.s32.totalorder %s23, 0
      %p111 = por %p109, %p110
      %s113 = sadd.s32 %s112, 1
      %p116 = scmp.eq.s32.totalorder %s17, 1
      %p117 = scmp.ne.s32.totalorder %s112, %s114
      %p118 = scmp.eq.s32.totalorder %s17, 0
      %p119 = por %p117, %p118
      %p120 = scmp.ne.s32.totalorder %s112, %s114
      %p121 = scmp.eq.s32.totalorder %s22, 1
      %p122 = por %p120, %p121
      %p123 = scmp.ne.s32.totalorder %s114, %s115
      %p124 = scmp.eq.s32.totalorder %s22, 0
      %p125 = por %p123, %p124
      %p126 = scmp.ne.s32.totalorder %s114, %s115
      %p127 = scmp.eq.s32.totalorder %s23, 1
      %p128 = por %p126, %p127
      %p130 = scmp.ne.s32.totalorder %s115, %s129
      %p131 = scmp.eq.s32.totalorder %s23, 0
      %p132 = por %p130, %p131
      %s134 = sadd.s32 %s133, 1
      %p137 = scmp.eq.s32.totalorder %s17, 1
      %p138 = scmp.ne.s32.totalorder %s133, %s135
      %p139 = scmp.eq.s32.totalorder %s17, 0
      %p140 = por %p138, %p139
      %p141 = scmp.ne.s32.totalorder %s133, %s135
      %p142 = scmp.eq.s32.totalorder %s22, 1
      %p143 = por %p141, %p142
      %p144 = scmp.ne.s32.totalorder %s135, %s136
      %p145 = scmp.eq.s32.totalorder %s22, 0
      %p146 = por %p144, %p145
      %p147 = scmp.ne.s32.totalorder %s135, %s136
      %p148 = scmp.eq.s32.totalorder %s23, 1
      %p149 = por %p147, %p148
      %p151 = scmp.ne.s32.totalorder %s136, %s150
      %p152 = scmp.eq.s32.totalorder %s23, 0
      %p153 = por %p151, %p152
      %s154 = ssub.s32 %s24, %s36
      %p155 = scmp.eq.s32.totalorder %s154, 0
      %s157 = sadd.s32 %s156, 1
      %s158 = scalar_select %p155, %s156, %s157
      %p161 = pneg %p155
      %p162 = scmp.eq.s32.totalorder %s17, 1
      %p163 = por %p161, %p162
      %p164 = scmp.ne.s32.totalorder %s156, %s159
      %p165 = scmp.eq.s32.totalorder %s17, 0
      %p166 = por %p164, %p165
      %p167 = scmp.ne.s32.totalorder %s156, %s159
      %p168 = scmp.eq.s32.totalorder %s22, 1
      %p169 = por %p167, %p168
      %p170 = scmp.ne.s32.totalorder %s159, %s160
      %p171 = scmp.eq.s32.totalorder %s22, 0
      %p172 = por %p170, %p171
      %p173 = scmp.ne.s32.totalorder %s159, %s160
      %p174 = scmp.eq.s32.totalorder %s23, 1
      %p175 = por %p173, %p174
      %p177 = scmp.ne.s32.totalorder %s160, %s176
      %p178 = scmp.eq.s32.totalorder %s23, 0
      %p179 = por %p177, %p178
      %s180 = ssub.s32 %s24, %s36
      %p181 = scmp.eq.s32.totalorder %s180, 0
      %s183 = sadd.s32 %s182, 1
      %s184 = scalar_select %p181, %s182, %s183
      %p187 = pneg %p181
      %p188 = scmp.eq.s32.totalorder %s17, 1
      %p189 = por %p187, %p188
      %p190 = scmp.ne.s32.totalorder %s182, %s185
      %p191 = scmp.eq.s32.totalorder %s17, 0
      %p192 = por %p190, %p191
      %p193 = scmp.ne.s32.totalorder %s182, %s185
      %p194 = scmp.eq.s32.totalorder %s22, 1
      %p195 = por %p193, %p194
      %p196 = scmp.ne.s32.totalorder %s185, %s186
      %p197 = scmp.eq.s32.totalorder %s22, 0
      %p198 = por %p196, %p197
      %p199 = scmp.ne.s32.totalorder %s185, %s186
      %p200 = scmp.eq.s32.totalorder %s23, 1
      %p201 = por %p199, %p200
      %p203 = scmp.ne.s32.totalorder %s186, %s202
      %p204 = scmp.eq.s32.totalorder %s23, 0
      %p205 = por %p203, %p204
      %s206 = ssub.s32 %s24, %s36
      %p207 = scmp.eq.s32.totalorder %s206, 0
      %s209 = sadd.s32 %s208, 1
      %s210 = scalar_select %p207, %s208, %s209
      %p213 = pneg %p207
      %p214 = scmp.eq.s32.totalorder %s17, 1
      %p215 = por %p213, %p214
      %p216 = scmp.ne.s32.totalorder %s208, %s211
      %p217 = scmp.eq.s32.totalorder %s17, 0
      %p218 = por %p216, %p217
      %p219 = scmp.ne.s32.totalorder %s208, %s211
      %p220 = scmp.eq.s32.totalorder %s22, 1
      %p221 = por %p219, %p220
      %p222 = scmp.ne.s32.totalorder %s211, %s212
      %p223 = scmp.eq.s32.totalorder %s22, 0
      %p224 = por %p222, %p223
      %p225 = scmp.ne.s32.totalorder %s211, %s212
      %p226 = scmp.eq.s32.totalorder %s23, 1
      %p227 = por %p225, %p226
      %p229 = scmp.ne.s32.totalorder %s212, %s228
      %p230 = scmp.eq.s32.totalorder %s23, 0
      %p231 = por %p229, %p230
      %p232 = scmp.le.s32.totalorder 1, %s17
      %p233 = scmp.lt.s32.totalorder %s17, 3
      %p234 = pnand %p232, %p233
      %p235 = pneg %p234
      // Predicated region
      $region9: #{tpu_custom_call.1} parent=5 // pred_check
        _
      $region10: #{tpu_custom_call.1} parent=5 // pred_check_branch
        %237 = sbr.rel (%p234) target = $region12
      $region11: #{tpu_custom_call.1} parent=5 // pred_region
        %s238 = ssub.s32 %s17, 1
        // Predicated region
        $region13: #{tpu_custom_call.1} parent=11 // pred_check
          %p239 = pneg %p50
        $region14: #{tpu_custom_call.1} parent=11 // pred_check_branch
          %241 = sbr.rel (%p239) target = $region16
        $region15: #{tpu_custom_call.1} parent=11 // pred_region
          _
        $region16: #{tpu_custom_call.1} parent=11 // pred_fallthru
          _
        // Predicated region
        $region17: #{tpu_custom_call.1} parent=11 // pred_check
          %p242 = pneg %p125
        $region18: #{tpu_custom_call.1} parent=11 // pred_check_branch
          %244 = sbr.rel (%p242) target = $region20
        $region19: #{tpu_custom_call.1} parent=11 // pred_region
          _
        $region20: #{tpu_custom_call.1} parent=11 // pred_fallthru
          _
        // Predicated region
        $region21: #{tpu_custom_call.1} parent=11 // pred_check
          %p245 = pneg %p146
        $region22: #{tpu_custom_call.1} parent=11 // pred_check_branch
          %247 = sbr.rel (%p245) target = $region24
        $region23: #{tpu_custom_call.1} parent=11 // pred_region
          _
        $region24: #{tpu_custom_call.1} parent=11 // pred_fallthru
          _
        // Predicated region
        $region25: #{tpu_custom_call.1} parent=11 // pred_check
          %p248 = pneg %p172
        $region26: #{tpu_custom_call.1} parent=11 // pred_check_branch
          %250 = sbr.rel (%p248) target = $region28
        $region27: #{tpu_custom_call.1} parent=11 // pred_region
          %p251 = scmp.lt.s32.totalorder %s26, 0
          %s252 = scalar_select %p251, %s26, 0
          %s253 = scalar_lea.vmem %s5, %s252
        $region28: #{tpu_custom_call.1} parent=11 // pred_fallthru
          _
        // Predicated region
        $region29: #{tpu_custom_call.1} parent=11 // pred_check
          %p254 = pneg %p198
        $region30: #{tpu_custom_call.1} parent=11 // pred_check_branch
          %256 = sbr.rel (%p254) target = $region32
        $region31: #{tpu_custom_call.1} parent=11 // pred_region
          %p257 = scmp.lt.s32.totalorder %s26, 0
          %s258 = scalar_select %p257, %s26, 0
          %s259 = scalar_lea.vmem %s6, %s258
        $region32: #{tpu_custom_call.1} parent=11 // pred_fallthru
          _
      $region12: #{tpu_custom_call.1} parent=5 // pred_fallthru
        _
      %p260 = scmp.lt.s32.totalorder %s17, 2
      // Predicated region
      $region33: #{tpu_custom_call.1} parent=5 // pred_check
        %p261 = pneg %p260
      $region34: #{tpu_custom_call.1} parent=5 // pred_check_branch
        %263 = sbr.rel (%p261) target = $region36
      $region35: #{tpu_custom_call.1} parent=5 // pred_region
        // Predicated region
        $region37: #{tpu_custom_call.1} parent=35 // pred_check
          %p264 = pneg %p70
        $region38: #{tpu_custom_call.1} parent=35 // pred_check_branch
          %266 = sbr.rel (%p264) target = $region40
        $region39: #{tpu_custom_call.1} parent=35 // pred_region
          %p267 = scmp.lt.s32.totalorder %s25, 1
          %s268 = scalar_select %p267, %s25, 1
          %s269 = smul.addr %s268, 2
          %s270 = smul.addr %s269, 8
          %s271 = scalar_lea.vmem %s1, %s270
        $region40: #{tpu_custom_call.1} parent=35 // pred_fallthru
          _
        // Predicated region
        $region41: #{tpu_custom_call.1} parent=35 // pred_check
          %p272 = pneg %p98
        $region42: #{tpu_custom_call.1} parent=35 // pred_check_branch
          %274 = sbr.rel (%p272) target = $region44
        $region43: #{tpu_custom_call.1} parent=35 // pred_region
          %s275 = sand.u32 %s88, 1
          %s276 = scalar_lea.sflag [#allocation4], %s275
          %s277 = sand.u32 %s88, 1
          %s278 = smul.addr %s277, 1024
          %s279 = scalar_lea.vmem [#allocation3], %s278
          %s280 = smul.u32 128, %s25
          %s282 = ssub.s32 16384, 16384
          %283 = vsyncadd %s276, %s282
          %s284 = sadd.s32 %s24, %s280
          %s285 = smul.addr %s284, 128
          %s286 = scalar_lea.hbm %s2, %s285
          %s287 = sshll.u32 %s279, 4
          %s288 = int_to_ptr.vmem [resolvable:$true] %s287
          %293 = dma.hbm_to_vmem [thread:$0]  %s286, 16384, %s288, %s276, 128, 128, 8
        $region44: #{tpu_custom_call.1} parent=35 // pred_fallthru
          _
      $region36: #{tpu_custom_call.1} parent=5 // pred_fallthru
        _
      %p294 = scmp.le.s32.totalorder 1, %s17
      %p295 = scmp.lt.s32.totalorder %s17, 3
      %p296 = pnand %p294, %p295
      %p297 = pneg %p296
      // Predicated region
      $region45: #{tpu_custom_call.1} parent=5 // pred_check
        _
      $region46: #{tpu_custom_call.1} parent=5 // pred_check_branch
        %299 = sbr.rel (%p296) target = $region48
      $region47: #{tpu_custom_call.1} parent=5 // pred_region
        %s300 = ssub.s32 %s17, 1
        %s301 = sand.u32 %s91, 1
        %s302 = scalar_lea.sflag [#allocation4], %s301
        %s303 = sand.u32 %s91, 1
        %s304 = smul.addr %s303, 1024
        %s305 = scalar_lea.vmem [#allocation3], %s304
        // Predicated region
        $region49: #{tpu_custom_call.1} parent=47 // pred_check
          %p306 = pneg %p104
        $region50: #{tpu_custom_call.1} parent=47 // pred_check_branch
          %308 = sbr.rel (%p306) target = $region52
        $region51: #{tpu_custom_call.1} parent=47 // pred_region
          %309 = dma.done %s302, 16384
        $region52: #{tpu_custom_call.1} parent=47 // pred_fallthru
          _
        %p310 = pneg %p50
        %p311 = pneg %p47
        %p312 = scmp.lt.s32.totalorder %s27, 1
        %s313 = scalar_select %p312, %s27, 1
        %s314 = smul.addr %s313, 2
        %s315 = smul.addr %s314, 8
        %s316 = scalar_lea.vmem %s1, %s315
        %p317 = pneg %p76
        %p318 = pneg %p73
        %s319 = sand.u32 %s91, 1
        %s320 = scalar_lea.sflag [#allocation4], %s319
        %s321 = sand.u32 %s91, 1
        %s322 = smul.addr %s321, 1024
        %s323 = scalar_lea.vmem [#allocation3], %s322
        %p324 = pneg %p104
        %p325 = pneg %p101
        %p326 = pneg %p125
        %p327 = pneg %p122
        %p328 = pneg %p146
        %p329 = pneg %p143
        %p330 = scmp.lt.s32.totalorder %s26, 0
        %s331 = scalar_select %p330, %s26, 0
        %s332 = scalar_lea.vmem %s5, %s331
        %p333 = pneg %p172
        %p334 = pneg %p169
        %p335 = scmp.lt.s32.totalorder %s26, 0
        %s336 = scalar_select %p335, %s26, 0
        %s337 = scalar_lea.vmem %s6, %s336
        %p338 = pneg %p198
        %p339 = pneg %p195
        %p340 = pneg %p224
        %p341 = pneg %p221
        %p342 = scmp.lt.s32.totalorder %s27, 1
        %s343 = scalar_select %p342, %s27, 1
        %s344 = smul.addr %s343, 2
        %s345 = smul.addr %s344, 8
        %s346 = scalar_lea.vmem %s1, %s345
        %s347 = smul.u32 128, %s27
        %p348 = scmp.lt.s32.totalorder %s26, 0
        %s349 = scalar_select %p348, %s26, 0
        %s350 = scalar_lea.vmem %s5, %s349
        %p351 = scmp.lt.s32.totalorder %s26, 0
        %s352 = scalar_select %p351, %s26, 0
        %s353 = scalar_lea.vmem %s6, %s352
        %p354 = scmp.eq.s32.totalorder %s27, 0
        // Predicated region
        $region53: #{tpu_custom_call.1} parent=47 // pred_check
          %p355 = pneg %p354
        $region54: #{tpu_custom_call.1} parent=47 // pred_check_branch
          %357 = sbr.rel (%p355) target = $region56
        $region55: #{tpu_custom_call.1} parent=47 // pred_region
          %358 = vst [vmem:[#allocation2] sm:$0xff] 0.0
          %359 = vst [vmem:[#allocation2 + $0x8] sm:$0xff] 0.0
        $region56: #{tpu_custom_call.1} parent=47 // pred_fallthru
          _
        %v360 = vld [vmem:[%s0] sm:$0xff]
        %v361 = vld [vmem:[%s0 + $0x8] sm:$0xff]
        %v362 = vld [vmem:[%s3] sm:$0x1]
        %v364 = vlaneseq
        %v365 = vshrl.u32 %v364, 7
        %v366 = vsub.s32 0, %v365
        %v367 = vrot.slane %v362, %v366
        %v369 = vmul.f32 %v360, %v367
        %v370 = vmul.f32 %v361, %v367
        %v371 = vld [vmem:[%s4] sm:$0x1]
        %v373 = vlaneseq
        %v374 = vshrl.u32 %v373, 7
        %v375 = vsub.s32 0, %v374
        %v376 = vrot.slane %v371, %v375
        %v378 = vadd.f32 %v369, %v376
        %v379 = vadd.f32 %v370, %v376
        %v380 = vld [vmem:[%s346] sm:$0xff]
        %v381 = vld [vmem:[%s346 + $0x8] sm:$0xff]
        %383 = vset.pattern.permute.xlu0 0
        %384 = vperm.xlu0 %383, %v380
        %v385 = vpop.permute.xlu0 %384
        %388 = vset.pattern.permute.xlu0 0
        %389 = vperm.xlu0 %388, %v381
        %v390 = vpop.permute.xlu0 %389
        %v392 = vmul.f32 %v385, %v378
        %v393 = vmul.f32 %v390, %v379
        %394 = vset.pattern.permute.xlu0 1
        %395 = vperm.xlu0 %394, %v380
        %v396 = vpop.permute.xlu0 %395
        %398 = vset.pattern.permute.xlu0 1
        %399 = vperm.xlu0 %398, %v381
        %v400 = vpop.permute.xlu0 %399
        %v402 = vmul.f32 %v396, %v378
        %v403 = vmul.f32 %v400, %v379
        %404 = vset.pattern.permute.xlu0 2
        %405 = vperm.xlu0 %404, %v380
        %v406 = vpop.permute.xlu0 %405
        %408 = vset.pattern.permute.xlu0 2
        %409 = vperm.xlu0 %408, %v381
        %v410 = vpop.permute.xlu0 %409
        %v412 = vmul.f32 %v406, %v378
        %v413 = vmul.f32 %v410, %v379
        %414 = vset.pattern.permute.xlu0 3
        %415 = vperm.xlu0 %414, %v380
        %v416 = vpop.permute.xlu0 %415
        %418 = vset.pattern.permute.xlu0 3
        %419 = vperm.xlu0 %418, %v381
        %v420 = vpop.permute.xlu0 %419
        %v422 = vmul.f32 %v416, %v378
        %v423 = vmul.f32 %v420, %v379
        %424 = vset.pattern.permute.xlu0 4
        %425 = vperm.xlu0 %424, %v380
        %v426 = vpop.permute.xlu0 %425
        %428 = vset.pattern.permute.xlu0 4
        %429 = vperm.xlu0 %428, %v381
        %v430 = vpop.permute.xlu0 %429
        %v432 = vmul.f32 %v426, %v378
        %v433 = vmul.f32 %v430, %v379
        %434 = vset.pattern.permute.xlu0 5
        %435 = vperm.xlu0 %434, %v380
        %v436 = vpop.permute.xlu0 %435
        %438 = vset.pattern.permute.xlu0 5
        %439 = vperm.xlu0 %438, %v381
        %v440 = vpop.permute.xlu0 %439
        %v442 = vmul.f32 %v436, %v378
        %v443 = vmul.f32 %v440, %v379
        %444 = vset.pattern.permute.xlu0 6
        %445 = vperm.xlu0 %444, %v380
        %v446 = vpop.permute.xlu0 %445
        %448 = vset.pattern.permute.xlu0 6
        %449 = vperm.xlu0 %448, %v381
        %v450 = vpop.permute.xlu0 %449
        %v452 = vmul.f32 %v446, %v378
        %v453 = vmul.f32 %v450, %v379
        %454 = vset.pattern.permute.xlu0 7
        %455 = vperm.xlu0 %454, %v380
        %v456 = vpop.permute.xlu0 %455
        %458 = vset.pattern.permute.xlu0 7
        %459 = vperm.xlu0 %458, %v381
        %v460 = vpop.permute.xlu0 %459
        %v462 = vmul.f32 %v456, %v378
        %v463 = vmul.f32 %v460, %v379
        %v464 = vld [vmem:[#allocation2] sm:$0xff]
        %v465 = vld [vmem:[#allocation2 + $0x8] sm:$0xff]
        %v466 = vld [vmem:[%s305] sm:$0xff]
        %v467 = vld [vmem:[%s305 + $0x8] sm:$0xff]
        %v468 = vld [vmem:[%s305 + $0x10] sm:$0xff]
        %v469 = vld [vmem:[%s305 + $0x18] sm:$0xff]
        %v470 = vld [vmem:[%s305 + $0x20] sm:$0xff]
        %v471 = vld [vmem:[%s305 + $0x28] sm:$0xff]
        %v472 = vld [vmem:[%s305 + $0x30] sm:$0xff]
        %v473 = vld [vmem:[%s305 + $0x38] sm:$0xff]
        %v474 = vld [vmem:[%s305 + $0x40] sm:$0xff]
        %v475 = vld [vmem:[%s305 + $0x48] sm:$0xff]
        %v476 = vld [vmem:[%s305 + $0x50] sm:$0xff]
        %v477 = vld [vmem:[%s305 + $0x58] sm:$0xff]
        %v478 = vld [vmem:[%s305 + $0x60] sm:$0xff]
        %v479 = vld [vmem:[%s305 + $0x68] sm:$0xff]
        %v480 = vld [vmem:[%s305 + $0x70] sm:$0xff]
        %v481 = vld [vmem:[%s305 + $0x78] sm:$0xff]
        %v482 = vld [vmem:[%s305 + $0x80] sm:$0xff]
        %v483 = vld [vmem:[%s305 + $0x88] sm:$0xff]
        %v484 = vld [vmem:[%s305 + $0x90] sm:$0xff]
        %v485 = vld [vmem:[%s305 + $0x98] sm:$0xff]
        %v486 = vld [vmem:[%s305 + $0xa0] sm:$0xff]
        %v487 = vld [vmem:[%s305 + $0xa8] sm:$0xff]
        %v488 = vld [vmem:[%s305 + $0xb0] sm:$0xff]
        %v489 = vld [vmem:[%s305 + $0xb8] sm:$0xff]
        %v490 = vld [vmem:[%s305 + $0xc0] sm:$0xff]
        %v491 = vld [vmem:[%s305 + $0xc8] sm:$0xff]
        %v492 = vld [vmem:[%s305 + $0xd0] sm:$0xff]
        %v493 = vld [vmem:[%s305 + $0xd8] sm:$0xff]
        %v494 = vld [vmem:[%s305 + $0xe0] sm:$0xff]
        %v495 = vld [vmem:[%s305 + $0xe8] sm:$0xff]
        %v496 = vld [vmem:[%s305 + $0xf0] sm:$0xff]
        %v497 = vld [vmem:[%s305 + $0xf8] sm:$0xff]
        %v498 = vld [vmem:[%s305 + $0x100] sm:$0xff]
        %v499 = vld [vmem:[%s305 + $0x108] sm:$0xff]
        %v500 = vld [vmem:[%s305 + $0x110] sm:$0xff]
        %v501 = vld [vmem:[%s305 + $0x118] sm:$0xff]
        %v502 = vld [vmem:[%s305 + $0x120] sm:$0xff]
        %v503 = vld [vmem:[%s305 + $0x128] sm:$0xff]
        %v504 = vld [vmem:[%s305 + $0x130] sm:$0xff]
        %v505 = vld [vmem:[%s305 + $0x138] sm:$0xff]
        %v506 = vld [vmem:[%s305 + $0x140] sm:$0xff]
        %v507 = vld [vmem:[%s305 + $0x148] sm:$0xff]
        %v508 = vld [vmem:[%s305 + $0x150] sm:$0xff]
        %v509 = vld [vmem:[%s305 + $0x158] sm:$0xff]
        %v510 = vld [vmem:[%s305 + $0x160] sm:$0xff]
        %v511 = vld [vmem:[%s305 + $0x168] sm:$0xff]
        %v512 = vld [vmem:[%s305 + $0x170] sm:$0xff]
        %v513 = vld [vmem:[%s305 + $0x178] sm:$0xff]
        %v514 = vld [vmem:[%s305 + $0x180] sm:$0xff]
        %v515 = vld [vmem:[%s305 + $0x188] sm:$0xff]
        %v516 = vld [vmem:[%s305 + $0x190] sm:$0xff]
        %v517 = vld [vmem:[%s305 + $0x198] sm:$0xff]
        %v518 = vld [vmem:[%s305 + $0x1a0] sm:$0xff]
        %v519 = vld [vmem:[%s305 + $0x1a8] sm:$0xff]
        %v520 = vld [vmem:[%s305 + $0x1b0] sm:$0xff]
        %v521 = vld [vmem:[%s305 + $0x1b8] sm:$0xff]
        %v522 = vld [vmem:[%s305 + $0x1c0] sm:$0xff]
        %v523 = vld [vmem:[%s305 + $0x1c8] sm:$0xff]
        %v524 = vld [vmem:[%s305 + $0x1d0] sm:$0xff]
        %v525 = vld [vmem:[%s305 + $0x1d8] sm:$0xff]
        %v526 = vld [vmem:[%s305 + $0x1e0] sm:$0xff]
        %v527 = vld [vmem:[%s305 + $0x1e8] sm:$0xff]
        %v528 = vld [vmem:[%s305 + $0x1f0] sm:$0xff]
        %v529 = vld [vmem:[%s305 + $0x1f8] sm:$0xff]
        %v530 = vld [vmem:[%s305 + $0x200] sm:$0xff]
        %v531 = vld [vmem:[%s305 + $0x208] sm:$0xff]
        %v532 = vld [vmem:[%s305 + $0x210] sm:$0xff]
        %v533 = vld [vmem:[%s305 + $0x218] sm:$0xff]
        %v534 = vld [vmem:[%s305 + $0x220] sm:$0xff]
        %v535 = vld [vmem:[%s305 + $0x228] sm:$0xff]
        %v536 = vld [vmem:[%s305 + $0x230] sm:$0xff]
        %v537 = vld [vmem:[%s305 + $0x238] sm:$0xff]
        %v538 = vld [vmem:[%s305 + $0x240] sm:$0xff]
        %v539 = vld [vmem:[%s305 + $0x248] sm:$0xff]
        %v540 = vld [vmem:[%s305 + $0x250] sm:$0xff]
        %v541 = vld [vmem:[%s305 + $0x258] sm:$0xff]
        %v542 = vld [vmem:[%s305 + $0x260] sm:$0xff]
        %v543 = vld [vmem:[%s305 + $0x268] sm:$0xff]
        %v544 = vld [vmem:[%s305 + $0x270] sm:$0xff]
        %v545 = vld [vmem:[%s305 + $0x278] sm:$0xff]
        %v546 = vld [vmem:[%s305 + $0x280] sm:$0xff]
        %v547 = vld [vmem:[%s305 + $0x288] sm:$0xff]
        %v548 = vld [vmem:[%s305 + $0x290] sm:$0xff]
        %v549 = vld [vmem:[%s305 + $0x298] sm:$0xff]
        %v550 = vld [vmem:[%s305 + $0x2a0] sm:$0xff]
        %v551 = vld [vmem:[%s305 + $0x2a8] sm:$0xff]
        %v552 = vld [vmem:[%s305 + $0x2b0] sm:$0xff]
        %v553 = vld [vmem:[%s305 + $0x2b8] sm:$0xff]
        %v554 = vld [vmem:[%s305 + $0x2c0] sm:$0xff]
        %v555 = vld [vmem:[%s305 + $0x2c8] sm:$0xff]
        %v556 = vld [vmem:[%s305 + $0x2d0] sm:$0xff]
        %v557 = vld [vmem:[%s305 + $0x2d8] sm:$0xff]
        %v558 = vld [vmem:[%s305 + $0x2e0] sm:$0xff]
        %v559 = vld [vmem:[%s305 + $0x2e8] sm:$0xff]
        %v560 = vld [vmem:[%s305 + $0x2f0] sm:$0xff]
        %v561 = vld [vmem:[%s305 + $0x2f8] sm:$0xff]
        %v562 = vld [vmem:[%s305 + $0x300] sm:$0xff]
        %v563 = vld [vmem:[%s305 + $0x308] sm:$0xff]
        %v564 = vld [vmem:[%s305 + $0x310] sm:$0xff]
        %v565 = vld [vmem:[%s305 + $0x318] sm:$0xff]
        %v566 = vld [vmem:[%s305 + $0x320] sm:$0xff]
        %v567 = vld [vmem:[%s305 + $0x328] sm:$0xff]
        %v568 = vld [vmem:[%s305 + $0x330] sm:$0xff]
        %v569 = vld [vmem:[%s305 + $0x338] sm:$0xff]
        %v570 = vld [vmem:[%s305 + $0x340] sm:$0xff]
        %v571 = vld [vmem:[%s305 + $0x348] sm:$0xff]
        %v572 = vld [vmem:[%s305 + $0x350] sm:$0xff]
        %v573 = vld [vmem:[%s305 + $0x358] sm:$0xff]
        %v574 = vld [vmem:[%s305 + $0x360] sm:$0xff]
        %v575 = vld [vmem:[%s305 + $0x368] sm:$0xff]
        %v576 = vld [vmem:[%s305 + $0x370] sm:$0xff]
        %v577 = vld [vmem:[%s305 + $0x378] sm:$0xff]
        %v578 = vld [vmem:[%s305 + $0x380] sm:$0xff]
        %v579 = vld [vmem:[%s305 + $0x388] sm:$0xff]
        %v580 = vld [vmem:[%s305 + $0x390] sm:$0xff]
        %v581 = vld [vmem:[%s305 + $0x398] sm:$0xff]
        %v582 = vld [vmem:[%s305 + $0x3a0] sm:$0xff]
        %v583 = vld [vmem:[%s305 + $0x3a8] sm:$0xff]
        %v584 = vld [vmem:[%s305 + $0x3b0] sm:$0xff]
        %v585 = vld [vmem:[%s305 + $0x3b8] sm:$0xff]
        %v586 = vld [vmem:[%s305 + $0x3c0] sm:$0xff]
        %v587 = vld [vmem:[%s305 + $0x3c8] sm:$0xff]
        %v588 = vld [vmem:[%s305 + $0x3d0] sm:$0xff]
        %v589 = vld [vmem:[%s305 + $0x3d8] sm:$0xff]
        %v590 = vld [vmem:[%s305 + $0x3e0] sm:$0xff]
        %v591 = vld [vmem:[%s305 + $0x3e8] sm:$0xff]
        %v592 = vld [vmem:[%s305 + $0x3f0] sm:$0xff]
        %v593 = vld [vmem:[%s305 + $0x3f8] sm:$0xff]
        %594 = vmatprep.subr.mxu0 0.0
        %595 = vmatpush1.msra.mxu0 %v466
        %596 = vmatprep.subr.mxu0 0.0
        %597 = vmatpush1.msra.mxu0 %v467
        %598 = vmatprep.subr.mxu0 0.0
        %599 = vmatpush1.msra.mxu0 %v468
        %600 = vmatprep.subr.mxu0 0.0
        %601 = vmatpush1.msra.mxu0 %v469
        %602 = vmatprep.subr.mxu0 0.0
        %603 = vmatpush1.msra.mxu0 %v470
        %604 = vmatprep.subr.mxu0 0.0
        %605 = vmatpush1.msra.mxu0 %v471
        %606 = vmatprep.subr.mxu0 0.0
        %607 = vmatpush1.msra.mxu0 %v472
        %608 = vmatprep.subr.mxu0 0.0
        %609 = vmatpush1.msra.mxu0 %v473
        %610 = vmatprep.subr.mxu0 0.0
        %611 = vmatpush1.msra.mxu0 %v474
        %612 = vmatprep.subr.mxu0 0.0
        %613 = vmatpush1.msra.mxu0 %v475
        %614 = vmatprep.subr.mxu0 0.0
        %615 = vmatpush1.msra.mxu0 %v476
        %616 = vmatprep.subr.mxu0 0.0
        %617 = vmatpush1.msra.mxu0 %v477
        %618 = vmatprep.subr.mxu0 0.0
        %619 = vmatpush1.msra.mxu0 %v478
        %620 = vmatprep.subr.mxu0 0.0
        %621 = vmatpush1.msra.mxu0 %v479
        %622 = vmatprep.subr.mxu0 0.0
        %623 = vmatpush1.msra.mxu0 %v480
        %624 = vmatprep.subr.mxu0 0.0
        %625 = vmatpush1.msra.mxu0 %v481
        %626 = vmatprep.subr.mxu0 0.0
        %627 = vmatpush1.msra.mxu0 %v482
        %628 = vmatprep.subr.mxu0 0.0
        %629 = vmatpush1.msra.mxu0 %v483
        %630 = vmatprep.subr.mxu0 0.0
        %631 = vmatpush1.msra.mxu0 %v484
        %632 = vmatprep.subr.mxu0 0.0
        %633 = vmatpush1.msra.mxu0 %v485
        %634 = vmatprep.subr.mxu0 0.0
        %635 = vmatpush1.msra.mxu0 %v486
        %636 = vmatprep.subr.mxu0 0.0
        %637 = vmatpush1.msra.mxu0 %v487
        %638 = vmatprep.subr.mxu0 0.0
        %639 = vmatpush1.msra.mxu0 %v488
        %640 = vmatprep.subr.mxu0 0.0
        %641 = vmatpush1.msra.mxu0 %v489
        %642 = vmatprep.subr.mxu0 0.0
        %643 = vmatpush1.msra.mxu0 %v490
        %644 = vmatprep.subr.mxu0 0.0
        %645 = vmatpush1.msra.mxu0 %v491
        %646 = vmatprep.subr.mxu0 0.0
        %647 = vmatpush1.msra.mxu0 %v492
        %648 = vmatprep.subr.mxu0 0.0
        %649 = vmatpush1.msra.mxu0 %v493
        %650 = vmatprep.subr.mxu0 0.0
        %651 = vmatpush1.msra.mxu0 %v494
        %652 = vmatprep.subr.mxu0 0.0
        %653 = vmatpush1.msra.mxu0 %v495
        %654 = vmatprep.subr.mxu0 0.0
        %655 = vmatpush1.msra.mxu0 %v496
        %656 = vmatprep.subr.mxu0 0.0
        %657 = vmatpush1.msra.mxu0 %v497
        %658 = vmatprep.mubr.f32.mxu0 %v402
        %659 = vmatmul.mubr.f32.gmra.mrb[0].mxu0 %v392
        %v660 = vpop.f32.mrb[0].mxu0
        %v661 = vadd.f32 0.0, %v660
        %v662 = vpop.f32.mrb[0].mxu0
        %663 = vmatprep.mubr.f32.mxu0 %v403
        %664 = vmatmul.mubr.f32.gmra.mrb[0].mxu0 %v393
        %v665 = vpop.f32.mrb[0].mxu0
        %v666 = vadd.f32 0.0, %v665
        %v667 = vpop.f32.mrb[0].mxu0
        %668 = vdwg.mxu0
        %669 = vmatprep.subr.mxu0 0.0
        %670 = vmatpush1.msra.mxu0 %v498
        %671 = vmatprep.subr.mxu0 0.0
        %672 = vmatpush1.msra.mxu0 %v499
        %673 = vmatprep.subr.mxu0 0.0
        %674 = vmatpush1.msra.mxu0 %v500
        %675 = vmatprep.subr.mxu0 0.0
        %676 = vmatpush1.msra.mxu0 %v501
        %677 = vmatprep.subr.mxu0 0.0
        %678 = vmatpush1.msra.mxu0 %v502
        %679 = vmatprep.subr.mxu0 0.0
        %680 = vmatpush1.msra.mxu0 %v503
        %681 = vmatprep.subr.mxu0 0.0
        %682 = vmatpush1.msra.mxu0 %v504
        %683 = vmatprep.subr.mxu0 0.0
        %684 = vmatpush1.msra.mxu0 %v505
        %685 = vmatprep.subr.mxu0 0.0
        %686 = vmatpush1.msra.mxu0 %v506
        %687 = vmatprep.subr.mxu0 0.0
        %688 = vmatpush1.msra.mxu0 %v507
        %689 = vmatprep.subr.mxu0 0.0
        %690 = vmatpush1.msra.mxu0 %v508
        %691 = vmatprep.subr.mxu0 0.0
        %692 = vmatpush1.msra.mxu0 %v509
        %693 = vmatprep.subr.mxu0 0.0
        %694 = vmatpush1.msra.mxu0 %v510
        %695 = vmatprep.subr.mxu0 0.0
        %696 = vmatpush1.msra.mxu0 %v511
        %697 = vmatprep.subr.mxu0 0.0
        %698 = vmatpush1.msra.mxu0 %v512
        %699 = vmatprep.subr.mxu0 0.0
        %700 = vmatpush1.msra.mxu0 %v513
        %701 = vmatprep.subr.mxu0 0.0
        %702 = vmatpush1.msra.mxu0 %v514
        %703 = vmatprep.subr.mxu0 0.0
        %704 = vmatpush1.msra.mxu0 %v515
        %705 = vmatprep.subr.mxu0 0.0
        %706 = vmatpush1.msra.mxu0 %v516
        %707 = vmatprep.subr.mxu0 0.0
        %708 = vmatpush1.msra.mxu0 %v517
        %709 = vmatprep.subr.mxu0 0.0
        %710 = vmatpush1.msra.mxu0 %v518
        %711 = vmatprep.subr.mxu0 0.0
        %712 = vmatpush1.msra.mxu0 %v519
        %713 = vmatprep.subr.mxu0 0.0
        %714 = vmatpush1.msra.mxu0 %v520
        %715 = vmatprep.subr.mxu0 0.0
        %716 = vmatpush1.msra.mxu0 %v521
        %717 = vmatprep.subr.mxu0 0.0
        %718 = vmatpush1.msra.mxu0 %v522
        %719 = vmatprep.subr.mxu0 0.0
        %720 = vmatpush1.msra.mxu0 %v523
        %721 = vmatprep.subr.mxu0 0.0
        %722 = vmatpush1.msra.mxu0 %v524
        %723 = vmatprep.subr.mxu0 0.0
        %724 = vmatpush1.msra.mxu0 %v525
        %725 = vmatprep.subr.mxu0 0.0
        %726 = vmatpush1.msra.mxu0 %v526
        %727 = vmatprep.subr.mxu0 0.0
        %728 = vmatpush1.msra.mxu0 %v527
        %729 = vmatprep.subr.mxu0 0.0
        %730 = vmatpush1.msra.mxu0 %v528
        %731 = vmatprep.subr.mxu0 0.0
        %732 = vmatpush1.msra.mxu0 %v529
        %733 = vmatprep.mubr.f32.mxu0 %v422
        %734 = vmatmul.mubr.f32.gmra.mrb[0].mxu0 %v412
        %v735 = vpop.f32.mrb[0].mxu0
        %v736 = vadd.f32 %v661, %v735
        %v737 = vpop.f32.mrb[0].mxu0
        %738 = vmatprep.mubr.f32.mxu0 %v423
        %739 = vmatmul.mubr.f32.gmra.mrb[0].mxu0 %v413
        %v740 = vpop.f32.mrb[0].mxu0
        %v741 = vadd.f32 %v666, %v740
        %v742 = vpop.f32.mrb[0].mxu0
        %743 = vdwg.mxu0
        %744 = vmatprep.subr.mxu0 0.0
        %745 = vmatpush1.msra.mxu0 %v530
        %746 = vmatprep.subr.mxu0 0.0
        %747 = vmatpush1.msra.mxu0 %v531
        %748 = vmatprep.subr.mxu0 0.0
        %749 = vmatpush1.msra.mxu0 %v532
        %750 = vmatprep.subr.mxu0 0.0
        %751 = vmatpush1.msra.mxu0 %v533
        %752 = vmatprep.subr.mxu0 0.0
        %753 = vmatpush1.msra.mxu0 %v534
        %754 = vmatprep.subr.mxu0 0.0
        %755 = vmatpush1.msra.mxu0 %v535
        %756 = vmatprep.subr.mxu0 0.0
        %757 = vmatpush1.msra.mxu0 %v536
        %758 = vmatprep.subr.mxu0 0.0
        %759 = vmatpush1.msra.mxu0 %v537
        %760 = vmatprep.subr.mxu0 0.0
        %761 = vmatpush1.msra.mxu0 %v538
        %762 = vmatprep.subr.mxu0 0.0
        %763 = vmatpush1.msra.mxu0 %v539
        %764 = vmatprep.subr.mxu0 0.0
        %765 = vmatpush1.msra.mxu0 %v540
        %766 = vmatprep.subr.mxu0 0.0
        %767 = vmatpush1.msra.mxu0 %v541
        %768 = vmatprep.subr.mxu0 0.0
        %769 = vmatpush1.msra.mxu0 %v542
        %770 = vmatprep.subr.mxu0 0.0
        %771 = vmatpush1.msra.mxu0 %v543
        %772 = vmatprep.subr.mxu0 0.0
        %773 = vmatpush1.msra.mxu0 %v544
        %774 = vmatprep.subr.mxu0 0.0
        %775 = vmatpush1.msra.mxu0 %v545
        %776 = vmatprep.subr.mxu0 0.0
        %777 = vmatpush1.msra.mxu0 %v546
        %778 = vmatprep.subr.mxu0 0.0
        %779 = vmatpush1.msra.mxu0 %v547
        %780 = vmatprep.subr.mxu0 0.0
        %781 = vmatpush1.msra.mxu0 %v548
        %782 = vmatprep.subr.mxu0 0.0
        %783 = vmatpush1.msra.mxu0 %v549
        %784 = vmatprep.subr.mxu0 0.0
        %785 = vmatpush1.msra.mxu0 %v550
        %786 = vmatprep.subr.mxu0 0.0
        %787 = vmatpush1.msra.mxu0 %v551
        %788 = vmatprep.subr.mxu0 0.0
        %789 = vmatpush1.msra.mxu0 %v552
        %790 = vmatprep.subr.mxu0 0.0
        %791 = vmatpush1.msra.mxu0 %v553
        %792 = vmatprep.subr.mxu0 0.0
        %793 = vmatpush1.msra.mxu0 %v554
        %794 = vmatprep.subr.mxu0 0.0
        %795 = vmatpush1.msra.mxu0 %v555
        %796 = vmatprep.subr.mxu0 0.0
        %797 = vmatpush1.msra.mxu0 %v556
        %798 = vmatprep.subr.mxu0 0.0
        %799 = vmatpush1.msra.mxu0 %v557
        %800 = vmatprep.subr.mxu0 0.0
        %801 = vmatpush1.msra.mxu0 %v558
        %802 = vmatprep.subr.mxu0 0.0
        %803 = vmatpush1.msra.mxu0 %v559
        %804 = vmatprep.subr.mxu0 0.0
        %805 = vmatpush1.msra.mxu0 %v560
        %806 = vmatprep.subr.mxu0 0.0
        %807 = vmatpush1.msra.mxu0 %v561
        %808 = vmatprep.mubr.f32.mxu0 %v442
        %809 = vmatmul.mubr.f32.gmra.mrb[0].mxu0 %v432
        %v810 = vpop.f32.mrb[0].mxu0
        %v811 = vadd.f32 %v736, %v810
        %v812 = vpop.f32.mrb[0].mxu0
        %813 = vmatprep.mubr.f32.mxu0 %v443
        %814 = vmatmul.mubr.f32.gmra.mrb[0].mxu0 %v433
        %v815 = vpop.f32.mrb[0].mxu0
        %v816 = vadd.f32 %v741, %v815
        %v817 = vpop.f32.mrb[0].mxu0
        %818 = vdwg.mxu0
        %819 = vmatprep.subr.mxu0 0.0
        %820 = vmatpush1.msra.mxu0 %v562
        %821 = vmatprep.subr.mxu0 0.0
        %822 = vmatpush1.msra.mxu0 %v563
        %823 = vmatprep.subr.mxu0 0.0
        %824 = vmatpush1.msra.mxu0 %v564
        %825 = vmatprep.subr.mxu0 0.0
        %826 = vmatpush1.msra.mxu0 %v565
        %827 = vmatprep.subr.mxu0 0.0
        %828 = vmatpush1.msra.mxu0 %v566
        %829 = vmatprep.subr.mxu0 0.0
        %830 = vmatpush1.msra.mxu0 %v567
        %831 = vmatprep.subr.mxu0 0.0
        %832 = vmatpush1.msra.mxu0 %v568
        %833 = vmatprep.subr.mxu0 0.0
        %834 = vmatpush1.msra.mxu0 %v569
        %835 = vmatprep.subr.mxu0 0.0
        %836 = vmatpush1.msra.mxu0 %v570
        %837 = vmatprep.subr.mxu0 0.0
        %838 = vmatpush1.msra.mxu0 %v571
        %839 = vmatprep.subr.mxu0 0.0
        %840 = vmatpush1.msra.mxu0 %v572
        %841 = vmatprep.subr.mxu0 0.0
        %842 = vmatpush1.msra.mxu0 %v573
        %843 = vmatprep.subr.mxu0 0.0
        %844 = vmatpush1.msra.mxu0 %v574
        %845 = vmatprep.subr.mxu0 0.0
        %846 = vmatpush1.msra.mxu0 %v575
        %847 = vmatprep.subr.mxu0 0.0
        %848 = vmatpush1.msra.mxu0 %v576
        %849 = vmatprep.subr.mxu0 0.0
        %850 = vmatpush1.msra.mxu0 %v577
        %851 = vmatprep.subr.mxu0 0.0
        %852 = vmatpush1.msra.mxu0 %v578
        %853 = vmatprep.subr.mxu0 0.0
        %854 = vmatpush1.msra.mxu0 %v579
        %855 = vmatprep.subr.mxu0 0.0
        %856 = vmatpush1.msra.mxu0 %v580
        %857 = vmatprep.subr.mxu0 0.0
        %858 = vmatpush1.msra.mxu0 %v581
        %859 = vmatprep.subr.mxu0 0.0
        %860 = vmatpush1.msra.mxu0 %v582
        %861 = vmatprep.subr.mxu0 0.0
        %862 = vmatpush1.msra.mxu0 %v583
        %863 = vmatprep.subr.mxu0 0.0
        %864 = vmatpush1.msra.mxu0 %v584
        %865 = vmatprep.subr.mxu0 0.0
        %866 = vmatpush1.msra.mxu0 %v585
        %867 = vmatprep.subr.mxu0 0.0
        %868 = vmatpush1.msra.mxu0 %v586
        %869 = vmatprep.subr.mxu0 0.0
        %870 = vmatpush1.msra.mxu0 %v587
        %871 = vmatprep.subr.mxu0 0.0
        %872 = vmatpush1.msra.mxu0 %v588
        %873 = vmatprep.subr.mxu0 0.0
        %874 = vmatpush1.msra.mxu0 %v589
        %875 = vmatprep.subr.mxu0 0.0
        %876 = vmatpush1.msra.mxu0 %v590
        %877 = vmatprep.subr.mxu0 0.0
        %878 = vmatpush1.msra.mxu0 %v591
        %879 = vmatprep.subr.mxu0 0.0
        %880 = vmatpush1.msra.mxu0 %v592
        %881 = vmatprep.subr.mxu0 0.0
        %882 = vmatpush1.msra.mxu0 %v593
        %883 = vmatprep.mubr.f32.mxu0 %v462
        %884 = vmatmul.mubr.f32.gmra.mrb[0].mxu0 %v452
        %v885 = vpop.f32.mrb[0].mxu0
        %v886 = vadd.f32 %v811, %v885
        %v887 = vpop.f32.mrb[0].mxu0
        %888 = vmatprep.mubr.f32.mxu0 %v463
        %889 = vmatmul.mubr.f32.gmra.mrb[0].mxu0 %v453
        %v890 = vpop.f32.mrb[0].mxu0
        %v891 = vadd.f32 %v816, %v890
        %v892 = vpop.f32.mrb[0].mxu0
        %893 = vdwg.mxu0
        %v894 = vadd.f32 %v464, %v886
        %v895 = vadd.f32 %v465, %v891
        %896 = vst [vmem:[#allocation2] sm:$0xff] %v894
        %897 = vst [vmem:[#allocation2 + $0x8] sm:$0xff] %v895
        %p898 = scmp.eq.s32.totalorder %s27, 1
        // Predicated region
        $region57: #{tpu_custom_call.1} parent=47 // pred_check
          %p899 = pneg %p898
        $region58: #{tpu_custom_call.1} parent=47 // pred_check_branch
          %901 = sbr.rel (%p899) target = $region60
        $region59: #{tpu_custom_call.1} parent=47 // pred_region
          %v902 = vld [vmem:[#allocation2] sm:$0xff]
          %v903 = vld [vmem:[#allocation2 + $0x8] sm:$0xff]
          %v904 = vld [vmem:[%s350] sm:$0x1]
          %v906 = vlaneseq
          %v907 = vshrl.u32 %v906, 7
          %v908 = vsub.s32 0, %v907
          %v909 = vrot.slane %v904, %v908
          %v911 = vmul.f32 %v902, %v909
          %v912 = vmul.f32 %v903, %v909
          %v913 = vld [vmem:[%s353] sm:$0x1]
          %v915 = vlaneseq
          %v916 = vshrl.u32 %v915, 7
          %v917 = vsub.s32 0, %v916
          %v918 = vrot.slane %v913, %v917
          %v920 = vadd.f32 %v911, %v918
          %v921 = vadd.f32 %v912, %v918
          %922 = vst [vmem:[#allocation6] sm:$0xff] %v920
          %923 = vst [vmem:[#allocation6 + $0x8] sm:$0xff] %v921
        $region60: #{tpu_custom_call.1} parent=47 // pred_fallthru
          _
        // Predicated region
        $region61: #{tpu_custom_call.1} parent=47 // pred_check
          %p924 = pneg %p221
        $region62: #{tpu_custom_call.1} parent=47 // pred_check_branch
          %926 = sbr.rel (%p924) target = $region64
        $region63: #{tpu_custom_call.1} parent=47 // pred_region
          %s928 = ssub.s32 256, 256
          %929 = vsyncadd [#allocation5], %s928
          %s930 = smul.addr %s26, 128
          %s931 = scalar_lea.hbm %s7, %s930
          %s932 = sshll.u32 [#allocation6], 4
          %s933 = int_to_ptr.vmem [resolvable:$true] %s932
          %938 = dma.vmem_to_hbm [thread:$0]  %s933, 256, %s931, [#allocation5], 128, 128, 8
        $region64: #{tpu_custom_call.1} parent=47 // pred_fallthru
          _
        // Predicated region
        $region65: #{tpu_custom_call.1} parent=47 // pred_check
          %p939 = pneg %p221
        $region66: #{tpu_custom_call.1} parent=47 // pred_check_branch
          %941 = sbr.rel (%p939) target = $region68
        $region67: #{tpu_custom_call.1} parent=47 // pred_region
          %942 = dma.done [#allocation5], 256
        $region68: #{tpu_custom_call.1} parent=47 // pred_fallthru
          _
      $region48: #{tpu_custom_call.1} parent=5 // pred_fallthru
        _
      %p943 = scmp.le.s32.totalorder 2, %s17
      // Predicated region
      $region69: #{tpu_custom_call.1} parent=5 // pred_check
        %p944 = pneg %p943
      $region70: #{tpu_custom_call.1} parent=5 // pred_check_branch
        %946 = sbr.rel (%p944) target = $region72
      $region71: #{tpu_custom_call.1} parent=5 // pred_region
        %s947 = ssub.s32 %s17, 2
      $region72: #{tpu_custom_call.1} parent=5 // pred_fallthru
        _
    $region6: #{tpu_custom_call.1} parent=1 // loop_footer
      %s21 = sadd.s32 1, %s17
    $region7: #{tpu_custom_call.1} parent=1 // loop_footer_branch
      %16 = sbr.rel target = $region3
    $region8: #{tpu_custom_call.1} parent=1 // loop_exit
      _
    %948 = vsyncpa [#allocation4], 1
    %s949 = scalar_lea.sflag [#allocation4], 1
    %950 = vsyncpa %s949, 1
    %951 = vsyncpa [#allocation5], 1
    %s952 = scalar_lea.sflag [#allocation5], 1
    %953 = vsyncpa %s952, 1

</llo_original>
